<compile_context>
chip_gen: v7x
topology: tpu7x:2x2x1
jax: 0.10.0
libtpu: 0.0.40
codegen_flags: <defaults>
</compile_context>

<pallas_src>
import jax
import jax.numpy as jnp
from jax.experimental import pallas as pl
from jax.experimental.pallas import tpu as pltpu

_LANE = 128


def _round_up(x, m):
    return -(-x // m) * m


def _gnn_final_kernel(w_ref, x_ref, fcw_ref, b_ref, o_ref):
    # w_ref:   (Bt, N, N*J)  WW in native layout: w[b, n, m*J + j] = WW[b, n, m, j]
    # x_ref:   (Bt, N, F)    node features
    # fcw_ref: (F, J*Cp)     fcw[f, j*Cp + c] = fc_w[c, j*F + f]  (class axis zero-padded)
    # b_ref:   (1, Cp)       bias (zero-padded), f32
    # o_ref:   (Bt, N, C)    logits, UNPADDED class axis (minimal HBM writeback)
    Bt, N, F = x_ref.shape
    C = o_ref.shape[-1]
    Cp = b_ref.shape[-1]
    J = fcw_ref.shape[-1] // Cp

    # Right factor of the fused contraction (tiny K=F dot, lane-dense output):
    #   y[b*N + m, j*Cp + c] = sum_f x[b, m, f] * fc_w[c, j*F + f]
    x_all = x_ref[...].reshape(Bt * N, F)
    y = jnp.dot(x_all, fcw_ref[...], preferred_element_type=jnp.float32)  # (Bt*N, J*Cp)

    # Regroup the j lanes into the K axis: xw[b, m*J + j, c].  The J*Cp lane
    # split is tile-aligned (Cp is a multiple of 128); the small VMEM relayout
    # it implies is far below the WW DMA volume and sits off the critical path.
    xw = y.reshape(Bt, N * J, Cp).astype(w_ref.dtype)

    # One long-K (K = N*J) batched MXU contraction per grid step, f32 accumulation.
    acc = jnp.einsum("bnk,bkc->bnc", w_ref[...], xw,
                     preferred_element_type=jnp.float32)                  # (Bt, N, Cp)

    # Bias + unpadded store: only the real C class columns go back to HBM
    # (masked vst; avoids the ~Cp/C x padded writeback and a wrapper slice pass).
    o_ref[...] = (acc[:, :, :C] + b_ref[:, :C]).astype(o_ref.dtype)


def _tpu_budget():
    """Generation-aware usable VMEM budget (bytes) and TensorCore count."""
    vmem_cap = 64 * 1024 * 1024
    num_cores = 1
    try:
        info = pltpu.get_tpu_info()
        vmem_cap = int(getattr(info, "vmem_capacity_bytes", vmem_cap))
        for attr in ("num_cores", "tensorcores_per_chip", "core_count"):
            v = getattr(info, attr, None)
            if isinstance(v, int) and v > 0:
                num_cores = v
                break
    except Exception:
        pass
    # ~48 MiB usable on v7x (64 MiB / TC), 64 MiB on v5e/v6e (128 MiB physical).
    budget = min(vmem_cap * 3 // 4, 64 * 1024 * 1024)
    return budget, num_cores


def _pick_batch_block(B, N, NJ, F, C, Cp, J, w_bytes, x_bytes, budget, num_cores):
    def vmem_usage(bt):
        # Double-buffered pipelined slabs + in-kernel temporaries.  VMEM layout
        # rounds sublanes to 8 and lanes to 128, so count the padded sizes.
        w_slab = 2 * bt * _round_up(N, 8) * _round_up(NJ, _LANE) * w_bytes
        x_slab = 2 * bt * _round_up(N, 8) * _round_up(F, _LANE) * x_bytes
        o_slab = 2 * bt * _round_up(N, 8) * _round_up(C, _LANE) * 4
        y_tmp = _round_up(bt * N, 8) * J * Cp * 4            # first-dot result (f32)
        xw_tmp = bt * _round_up(N * J, 8) * Cp * w_bytes     # relayout copy
        acc_tmp = bt * _round_up(N, 8) * Cp * 4              # einsum accumulator
        consts = 2 * (_round_up(F, 8) * J * Cp * x_bytes + 8 * Cp * 4)
        return w_slab + x_slab + o_slab + y_tmp + xw_tmp + acc_tmp + consts

    # Size the batch tile by bytes: each grid step should move a few MiB of WW
    # so the ~0.35 us/step pipeline overhead is amortized (HBM-roofline DMA).
    target_step_bytes = 2 * 1024 * 1024
    per_b_bytes = N * NJ * w_bytes + N * F * x_bytes + N * C * 4
    bt = max(1, min(B, -(-target_step_bytes // per_b_bytes)))
    # Keep >= num_cores grid steps only when the chip has multiple TensorCores
    # (v7x); do not shrink the tile on single-TC v5e/v6e.
    if num_cores > 1 and B >= num_cores:
        bt = min(bt, -(-B // num_cores))
    # Shrink until the whole working set fits the generation-aware VMEM budget.
    lo, hi = 1, bt
    while lo < hi:
        mid = (lo + hi + 1) // 2
        if vmem_usage(mid) <= budget:
            lo = mid
        else:
            hi = mid - 1
    return lo


def gnn_atomic_final_forward(WW, x, fc_w, fc_b, *, batch_block=None):
    """WW: (B,N,N,J), x: (B,N,F), fc_w: (C, J*F), fc_b: (C,).  Returns (WW, out).

    WW and x are consumed in their given dtypes — pass bf16 tensors (produced
    upstream) to halve the dominant WW HBM traffic; no wrapper-side cast of WW
    is performed (it would cost an extra full HBM pass on a mem-bound kernel).
    """
    B, N, N2, J = WW.shape
    assert N2 == N
    F = x.shape[-1]
    C = fc_w.shape[0]
    assert fc_w.shape == (C, J * F) and fc_b.shape == (C,)
    Cp = _round_up(C, _LANE)      # lane-dense class axis for the MXU / intermediates
    NJ = N * J

    # WW stays in its native (m-major, j-minor) layout: contiguous-trailing-dim
    # reshape only — no transpose, no cast, no extra HBM pass over WW.
    w2 = WW.reshape(B, N, NJ)

    # Re-group (and zero-pad) the tiny fc weight so the per-j pieces line up
    # with WW's contraction order:  fcw[f, j*Cp + c] = fc_w[c, j*F + f].
    fcw = fc_w.T.reshape(J, F, C).transpose(1, 0, 2)                      # (F, J, C)
    fcw = jnp.pad(fcw, ((0, 0), (0, 0), (0, Cp - C))).reshape(F, J * Cp)
    fcw = fcw.astype(x.dtype)                 # keep the small first dot in x's dtype
    bias = jnp.pad(fc_b, (0, Cp - C)).reshape(1, Cp).astype(jnp.float32)

    budget, num_cores = _tpu_budget()
    w_bytes = jnp.dtype(WW.dtype).itemsize
    x_bytes = jnp.dtype(x.dtype).itemsize
    if batch_block is None:
        batch_block = _pick_batch_block(B, N, NJ, F, C, Cp, J,
                                        w_bytes, x_bytes, budget, num_cores)
    Bt = max(1, min(int(batch_block), B))
    # TODO(synk): for very large N (a single (N, N*J) slab exceeding the budget
    # even at Bt=1 — hit ~2x sooner on v7x's 64 MiB per-TC VMEM) add an
    # "arbitrary" m-block reduction grid axis with a pl.when-initialized VMEM
    # accumulator.

    out = pl.pallas_call(
        _gnn_final_kernel,
        out_shape=jax.ShapeDtypeStruct((B, N, C), jnp.float32),
        grid_spec=pltpu.PrefetchScalarGridSpec(
            num_scalar_prefetch=0,
            grid=(pl.cdiv(B, Bt),),
            in_specs=[
                pl.BlockSpec((Bt, N, NJ), lambda b: (b, 0, 0)),
                pl.BlockSpec((Bt, N, F), lambda b: (b, 0, 0)),
                pl.BlockSpec((F, J * Cp), lambda b: (0, 0)),
                pl.BlockSpec((1, Cp), lambda b: (0, 0)),
            ],
            out_specs=pl.BlockSpec((Bt, N, C), lambda b: (b, 0, 0)),
        ),
        compiler_params=pltpu.CompilerParams(
            dimension_semantics=("parallel",),
            vmem_limit_bytes=int(budget),
        ),
    )(w2, x, fcw, bias)

    return WW, out


def _ref_forward(WW, x, fc_w, fc_b):
    # Pure-JAX reference of GMul + Linear (matches torch semantics / concat order).
    B, N, _, J = WW.shape
    F = x.shape[-1]
    gm = jnp.einsum("bnmj,bmf->bnjf", WW, x).reshape(B, N, J * F)
    return gm @ fc_w.T + fc_b


if __name__ == "__main__":
    # Small shapes implied by the module: feature_maps[0]=F, J graph operators,
    # n_classes output channels.
    B, N, F, J, C = 4, 16, 4, 3, 5

    key = jax.random.PRNGKey(0)
    k1, k2, k3, k4 = jax.random.split(key, 4)
    WW = jax.random.normal(k1, (B, N, N, J), dtype=jnp.float32)
    x = jax.random.normal(k2, (B, N, F), dtype=jnp.float32)

    # Deterministic nn.Linear-style init: U(-1/sqrt(in), 1/sqrt(in)), in = J*F.
    bound = 1.0 / (J * F) ** 0.5
    fc_w = jax.random.uniform(k3, (C, J * F), minval=-bound, maxval=bound,
                              dtype=jnp.float32)
    fc_b = jax.random.uniform(k4, (C,), minval=-bound, maxval=bound,
                              dtype=jnp.float32)

    # f32 path (matches the reference up to dot reassociation).
    ref = _ref_forward(WW, x, fc_w, fc_b)
    _, out = gnn_atomic_final_forward(WW, x, fc_w, fc_b)
    out = jax.block_until_ready(out)
    assert out.shape == (B, N, C)
    assert jnp.allclose(out, ref, atol=1e-4, rtol=1e-4), "f32 mismatch vs reference"

    # bf16 path: WW/x provided in bf16 (as if produced upstream) — the kernel
    # then reads half the WW bytes.  xw is also rounded to bf16 before the
    # long-K contraction, so tolerances are loose.
    WW_b = WW.astype(jnp.bfloat16)
    x_b = x.astype(jnp.bfloat16)
    ref_b = _ref_forward(WW_b.astype(jnp.float32), x_b.astype(jnp.float32), fc_w, fc_b)
    _, out_b = gnn_atomic_final_forward(WW_b, x_b, fc_w, fc_b)
    out_b = jax.block_until_ready(out_b)
    assert out_b.shape == (B, N, C)
    assert jnp.allclose(out_b, ref_b, atol=1e-1, rtol=1e-1), "bf16 mismatch vs reference"

    print("KERNEL_OK")
</pallas_src>

<mosaic_0001>
module attributes {stable_mosaic.version = 11 : i64} {
  func.func @_gnn_final_kernel(%arg0: i32, %arg1: memref<4x16x48xf32, #tpu.memory_space<vmem>>, %arg2: memref<4x16x4xf32, #tpu.memory_space<vmem>>, %arg3: memref<4x384xf32, #tpu.memory_space<vmem>>, %arg4: memref<1x128xf32, #tpu.memory_space<vmem>>, %arg5: memref<4x16x5xf32, #tpu.memory_space<vmem>>) attributes {dimension_semantics = [#tpu.dimension_semantics<parallel>], iteration_bounds = array<i64: 1>, scalar_prefetch = 0 : i64, scratch_operands = 0 : i64, tpu.core_type = #tpu.core_type<tc>, window_params = [{transform_indices = @transform_0, window_bounds = array<i64: 4, 16, 48>}, {transform_indices = @transform_1, window_bounds = array<i64: 4, 16, 4>}, {pipeline_mode = #tpu.pipeline_mode<synchronous>, transform_indices = @transform_2, window_bounds = array<i64: 4, 384>}, {pipeline_mode = #tpu.pipeline_mode<synchronous>, transform_indices = @transform_3, window_bounds = array<i64: 1, 128>}, {transform_indices = @transform_4, window_bounds = array<i64: 4, 16, 5>}]} {
    %c0 = arith.constant 0 : index
    %c0_0 = arith.constant 0 : index
    %c0_1 = arith.constant 0 : index
    %0 = vector.load %arg2[%c0, %c0_0, %c0_1] : memref<4x16x4xf32, #tpu.memory_space<vmem>>, vector<4x16x4xf32>
    %1 = vector.shape_cast %0 : vector<4x16x4xf32> to vector<64x4xf32>
    %c0_2 = arith.constant 0 : index
    %c0_3 = arith.constant 0 : index
    %2 = vector.load %arg3[%c0_2, %c0_3] : memref<4x384xf32, #tpu.memory_space<vmem>>, vector<4x384xf32>
    %cst = arith.constant dense<0.000000e+00> : vector<64x384xf32>
    %3 = tpu.matmul %1, %2, %cst {dimension_numbers = #tpu.dot_dimension_numbers<[1], [0], [0], [1], [0, 0, 1, 1], [], []>} : vector<64x4xf32>, vector<4x384xf32>, vector<64x384xf32> -> vector<64x384xf32>
    %4 = vector.shape_cast %3 : vector<64x384xf32> to vector<4x48x128xf32>
    %c0_4 = arith.constant 0 : index
    %c0_5 = arith.constant 0 : index
    %c0_6 = arith.constant 0 : index
    %5 = vector.load %arg1[%c0_4, %c0_5, %c0_6] : memref<4x16x48xf32, #tpu.memory_space<vmem>>, vector<4x16x48xf32>
    "tpu.trace_start"() <{level = 10 : i32, message = "bnk,bkc->bnc"}> : () -> ()
    %cst_7 = arith.constant dense<0.000000e+00> : vector<4x16x128xf32>
    %6 = tpu.matmul %5, %4, %cst_7 {dimension_numbers = #tpu.dot_dimension_numbers<[2], [1], [1], [2], [0, 0, 0, 1, 1, 2], [0], [0]>} : vector<4x16x48xf32>, vector<4x48x128xf32>, vector<4x16x128xf32> -> vector<4x16x128xf32>
    "tpu.trace_stop"() : () -> ()
    %7 = vector.extract_strided_slice %6 {offsets = [0, 0, 0], sizes = [4, 16, 5], strides = [1, 1, 1]} : vector<4x16x128xf32> to vector<4x16x5xf32>
    %c0_8 = arith.constant 0 : index
    %c0_9 = arith.constant 0 : index
    %8 = vector.load %arg4[%c0_8, %c0_9] : memref<1x128xf32, #tpu.memory_space<vmem>>, vector<1x5xf32>
    %9 = vector.shape_cast %8 : vector<1x5xf32> to vector<1x1x5xf32>
    %10 = vector.broadcast %9 : vector<1x1x5xf32> to vector<4x16x5xf32>
    %11 = arith.addf %7, %10 : vector<4x16x5xf32>
    %c0_10 = arith.constant 0 : index
    %c0_11 = arith.constant 0 : index
    %c0_12 = arith.constant 0 : index
    %12 = vector.load %arg5[%c0_10, %c0_11, %c0_12] : memref<4x16x5xf32, #tpu.memory_space<vmem>>, vector<4x16x5xf32>
    tpu.vector_store %arg5[%c0_10, %c0_11, %c0_12], %11 {strides = array<i32>} : memref<4x16x5xf32, #tpu.memory_space<vmem>>, vector<4x16x5xf32>,
    return
  }
  func.func @transform_0(%arg0: i32) -> (i32, i32, i32) {
    %c0_i32 = arith.constant 0 : i32
    %c0_i32_0 = arith.constant 0 : i32
    %c0_i32_1 = arith.constant 0 : i32
    return %arg0, %c0_i32, %c0_i32_0 : i32, i32, i32
  }
  func.func @transform_1(%arg0: i32) -> (i32, i32, i32) {
    %c0_i32 = arith.constant 0 : i32
    %c0_i32_0 = arith.constant 0 : i32
    %c0_i32_1 = arith.constant 0 : i32
    return %arg0, %c0_i32, %c0_i32_0 : i32, i32, i32
  }
  func.func @transform_2(%arg0: i32) -> (i32, i32) {
    %c0_i32 = arith.constant 0 : i32
    %c0_i32_0 = arith.constant 0 : i32
    %c0_i32_1 = arith.constant 0 : i32
    return %c0_i32, %c0_i32_0 : i32, i32
  }
  func.func @transform_3(%arg0: i32) -> (i32, i32) {
    %c0_i32 = arith.constant 0 : i32
    %c0_i32_0 = arith.constant 0 : i32
    %c0_i32_1 = arith.constant 0 : i32
    return %c0_i32, %c0_i32_0 : i32, i32
  }
  func.func @transform_4(%arg0: i32) -> (i32, i32, i32) {
    %c0_i32 = arith.constant 0 : i32
    %c0_i32_0 = arith.constant 0 : i32
    %c0_i32_1 = arith.constant 0 : i32
    return %arg0, %c0_i32, %c0_i32_0 : i32, i32, i32
  }
}

</mosaic_0001>

<llo_original>
// kernel: tpu_custom_call.1
$region0: #{tpu_custom_call.1}
  #allocation0 [shape = 'u32[]', space=smem, size = 0x4, offset = 0x4, fixed_abs, tag = 'smem constant byte address 0x4 - core index']
  #allocation1 [shape = 'u32[144,128]{1,0:T(1,128)}', space=vmem, size = 0x12000, scoped, tag = 'internal scratch']
  %s0 = inlined_call_operand.vmem [shape: f32[4,16,48], index: 0, kind: input, shape index: {}]
  %s1 = inlined_call_operand.vmem [shape: f32[4,16,4], index: 1, kind: input, shape index: {}]
  %s2 = inlined_call_operand.vmem [shape: f32[4,384], index: 2, kind: input, shape index: {}]
  %s3 = inlined_call_operand.vmem [shape: f32[1,128], index: 3, kind: input, shape index: {}]
  %s4 = inlined_call_operand.vmem [shape: f32[4,16,5], index: 4, kind: output, shape index: {}]
  %s5 = sld [smem:[#allocation0]]
  $region26: #{tpu_custom_call.1} parent=0
    _
  %s7 = ssub.s32 1, %s5
  %s8 = scalar_select 0, %s7, %s5
  // Predicated region
  $region2: #{tpu_custom_call.1} parent=0 // pred_check
    _
  $region3: #{tpu_custom_call.1} parent=0 // pred_check_branch
    %10 = sbr.rel (0) target = $region5
  $region4: #{tpu_custom_call.1} parent=0 // pred_region
    _
  $region5: #{tpu_custom_call.1} parent=0 // pred_fallthru
    _
  // Predicated region
  $region6: #{tpu_custom_call.1} parent=0 // pred_check
    _
  $region7: #{tpu_custom_call.1} parent=0 // pred_check_branch
    %12 = sbr.rel (0) target = $region9
  $region8: #{tpu_custom_call.1} parent=0 // pred_region
    _
  $region9: #{tpu_custom_call.1} parent=0 // pred_fallthru
    _
  // Predicated region
  $region10: #{tpu_custom_call.1} parent=0 // pred_check
    _
  $region11: #{tpu_custom_call.1} parent=0 // pred_check_branch
    %14 = sbr.rel (0) target = $region13
  $region12: #{tpu_custom_call.1} parent=0 // pred_region
    _
  $region13: #{tpu_custom_call.1} parent=0 // pred_fallthru
    _
  // Predicated region
  $region14: #{tpu_custom_call.1} parent=0 // pred_check
    _
  $region15: #{tpu_custom_call.1} parent=0 // pred_check_branch
    %16 = sbr.rel (0) target = $region17
  $region16: #{tpu_custom_call.1} parent=0 // pred_region
    _
  $region17: #{tpu_custom_call.1} parent=0 // pred_fallthru
    _
  %v17 = vld [vmem:[%s1] sm:$0xff]
  %v18 = vld [vmem:[%s1 + $0x8] sm:$0xff]
  %v19 = vld [vmem:[%s1 + $0x10] sm:$0xff]
  %v20 = vld [vmem:[%s1 + $0x18] sm:$0xff]
  %v21 = vld [vmem:[%s1 + $0x20] sm:$0xff]
  %v22 = vld [vmem:[%s1 + $0x28] sm:$0xff]
  %v23 = vld [vmem:[%s1 + $0x30] sm:$0xff]
  %v24 = vld [vmem:[%s1 + $0x38] sm:$0xff]
  %v25 = vld [vmem:[%s2] sm:$0xff]
  %v26 = vld [vmem:[%s2 + $0x8] sm:$0xf]
  %v29 = vcombine.high %v25, %v25
  %vm30 = vcmask 31744
  %v32 = vsel %vm30, %v17, 0
  %v35 = vsel %vm30, %v18, 0
  %v38 = vsel %vm30, %v19, 0
  %v41 = vsel %vm30, %v20, 0
  %v44 = vsel %vm30, %v21, 0
  %v47 = vsel %vm30, %v22, 0
  %v50 = vsel %vm30, %v23, 0
  %v53 = vsel %vm30, %v24, 0
  %vm55 = vcmask 1043456
  %v56 = vsel %vm55, %v25, 0
  %v58 = vsel %vm55, %v29, 0
  %v60 = vsel %vm55, %v26, 0
  %62 = vmatprep.subr.mxu0 %v58
  %63 = vmatpush1.msra.mxu0 %v56
  %64 = vmatprep.subr.mxu0 0.0
  %65 = vmatpush1.msra.mxu0 0.0
  %66 = vmatprep.subr.mxu0 0.0
  %67 = vmatpush1.msra.mxu0 0.0
  %68 = vmatprep.subr.mxu0 0.0
  %69 = vmatpush1.msra.mxu0 0.0
  %70 = vmatprep.subr.mxu0 0.0
  %71 = vmatpush1.msra.mxu0 0.0
  %72 = vmatprep.subr.mxu0 0.0
  %73 = vmatpush1.msra.mxu0 0.0
  %74 = vmatprep.subr.mxu0 0.0
  %75 = vmatpush1.msra.mxu0 0.0
  %76 = vmatprep.subr.mxu0 0.0
  %77 = vmatpush1.msra.mxu0 0.0
  %78 = vmatprep.subr.mxu0 0.0
  %79 = vmatpush1.msra.mxu0 0.0
  %80 = vmatprep.subr.mxu0 0.0
  %81 = vmatpush1.msra.mxu0 0.0
  %82 = vmatprep.subr.mxu0 0.0
  %83 = vmatpush1.msra.mxu0 0.0
  %84 = vmatprep.subr.mxu0 0.0
  %85 = vmatpush1.msra.mxu0 0.0
  %86 = vmatprep.subr.mxu0 0.0
  %87 = vmatpush1.msra.mxu0 0.0
  %88 = vmatprep.subr.mxu0 0.0
  %89 = vmatpush1.msra.mxu0 0.0
  %90 = vmatprep.subr.mxu0 0.0
  %91 = vmatpush1.msra.mxu0 0.0
  %92 = vmatprep.subr.mxu0 0.0
  %93 = vmatpush1.msra.mxu0 0.0
  %94 = vmatprep.subr.mxu0 0.0
  %95 = vmatpush1.msra.mxu0 0.0
  %96 = vmatprep.subr.mxu0 0.0
  %97 = vmatpush1.msra.mxu0 0.0
  %98 = vmatprep.subr.mxu0 0.0
  %99 = vmatpush1.msra.mxu0 0.0
  %100 = vmatprep.subr.mxu0 0.0
  %101 = vmatpush1.msra.mxu0 0.0
  %102 = vmatprep.subr.mxu0 0.0
  %103 = vmatpush1.msra.mxu0 0.0
  %104 = vmatprep.subr.mxu0 0.0
  %105 = vmatpush1.msra.mxu0 0.0
  %106 = vmatprep.subr.mxu0 0.0
  %107 = vmatpush1.msra.mxu0 0.0
  %108 = vmatprep.subr.mxu0 0.0
  %109 = vmatpush1.msra.mxu0 0.0
  %110 = vmatprep.subr.mxu0 0.0
  %111 = vmatpush1.msra.mxu0 0.0
  %112 = vmatprep.subr.mxu0 0.0
  %113 = vmatpush1.msra.mxu0 0.0
  %114 = vmatprep.subr.mxu0 0.0
  %115 = vmatpush1.msra.mxu0 0.0
  %116 = vmatprep.subr.mxu0 0.0
  %117 = vmatpush1.msra.mxu0 0.0
  %118 = vmatprep.subr.mxu0 0.0
  %119 = vmatpush1.msra.mxu0 0.0
  %120 = vmatprep.subr.mxu0 0.0
  %121 = vmatpush1.msra.mxu0 0.0
  %122 = vmatprep.subr.mxu0 0.0
  %123 = vmatpush1.msra.mxu0 0.0
  %124 = vmatprep.subr.mxu0 0.0
  %125 = vmatpush1.msra.mxu0 0.0
  %126 = vmatprep.mubr.f32.mxu0 0.0
  %127 = vmatmul.mubr.f32.gmra.mrb[0].mxu0 %v32
  %v128 = vpop.f32.mrb[0].mxu0
  %v129 = vadd.f32 0.0, %v128
  %v130 = vpop.f32.mrb[0].mxu0
  %v131 = vadd.f32 0.0, %v130
  %132 = vmatprep.mubr.f32.mxu0 0.0
  %133 = vmatmul.mubr.f32.gmra.mrb[0].mxu0 %v35
  %v134 = vpop.f32.mrb[0].mxu0
  %v135 = vadd.f32 0.0, %v134
  %v136 = vpop.f32.mrb[0].mxu0
  %v137 = vadd.f32 0.0, %v136
  %138 = vmatprep.mubr.f32.mxu0 0.0
  %139 = vmatmul.mubr.f32.gmra.mrb[0].mxu0 %v38
  %v140 = vpop.f32.mrb[0].mxu0
  %v141 = vadd.f32 0.0, %v140
  %v142 = vpop.f32.mrb[0].mxu0
  %v143 = vadd.f32 0.0, %v142
  %144 = vmatprep.mubr.f32.mxu0 0.0
  %145 = vmatmul.mubr.f32.gmra.mrb[0].mxu0 %v41
  %v146 = vpop.f32.mrb[0].mxu0
  %v147 = vadd.f32 0.0, %v146
  %v148 = vpop.f32.mrb[0].mxu0
  %v149 = vadd.f32 0.0, %v148
  %150 = vmatprep.mubr.f32.mxu0 0.0
  %151 = vmatmul.mubr.f32.gmra.mrb[0].mxu0 %v44
  %v152 = vpop.f32.mrb[0].mxu0
  %v153 = vadd.f32 0.0, %v152
  %v154 = vpop.f32.mrb[0].mxu0
  %v155 = vadd.f32 0.0, %v154
  %156 = vmatprep.mubr.f32.mxu0 0.0
  %157 = vmatmul.mubr.f32.gmra.mrb[0].mxu0 %v47
  %v158 = vpop.f32.mrb[0].mxu0
  %v159 = vadd.f32 0.0, %v158
  %v160 = vpop.f32.mrb[0].mxu0
  %v161 = vadd.f32 0.0, %v160
  %162 = vmatprep.mubr.f32.mxu0 0.0
  %163 = vmatmul.mubr.f32.gmra.mrb[0].mxu0 %v50
  %v164 = vpop.f32.mrb[0].mxu0
  %v165 = vadd.f32 0.0, %v164
  %v166 = vpop.f32.mrb[0].mxu0
  %v167 = vadd.f32 0.0, %v166
  %168 = vmatprep.mubr.f32.mxu0 0.0
  %169 = vmatmul.mubr.f32.gmra.mrb[0].mxu0 %v53
  %v170 = vpop.f32.mrb[0].mxu0
  %v171 = vadd.f32 0.0, %v170
  %v172 = vpop.f32.mrb[0].mxu0
  %v173 = vadd.f32 0.0, %v172
  %174 = vdwg.mxu0
  %175 = vmatprep.subr.mxu0 0.0
  %176 = vmatpush1.msra.mxu0 %v60
  %177 = vmatprep.subr.mxu0 0.0
  %178 = vmatpush1.msra.mxu0 0.0
  %179 = vmatprep.subr.mxu0 0.0
  %180 = vmatpush1.msra.mxu0 0.0
  %181 = vmatprep.subr.mxu0 0.0
  %182 = vmatpush1.msra.mxu0 0.0
  %183 = vmatprep.subr.mxu0 0.0
  %184 = vmatpush1.msra.mxu0 0.0
  %185 = vmatprep.subr.mxu0 0.0
  %186 = vmatpush1.msra.mxu0 0.0
  %187 = vmatprep.subr.mxu0 0.0
  %188 = vmatpush1.msra.mxu0 0.0
  %189 = vmatprep.subr.mxu0 0.0
  %190 = vmatpush1.msra.mxu0 0.0
  %191 = vmatprep.subr.mxu0 0.0
  %192 = vmatpush1.msra.mxu0 0.0
  %193 = vmatprep.subr.mxu0 0.0
  %194 = vmatpush1.msra.mxu0 0.0
  %195 = vmatprep.subr.mxu0 0.0
  %196 = vmatpush1.msra.mxu0 0.0
  %197 = vmatprep.subr.mxu0 0.0
  %198 = vmatpush1.msra.mxu0 0.0
  %199 = vmatprep.subr.mxu0 0.0
  %200 = vmatpush1.msra.mxu0 0.0
  %201 = vmatprep.subr.mxu0 0.0
  %202 = vmatpush1.msra.mxu0 0.0
  %203 = vmatprep.subr.mxu0 0.0
  %204 = vmatpush1.msra.mxu0 0.0
  %205 = vmatprep.subr.mxu0 0.0
  %206 = vmatpush1.msra.mxu0 0.0
  %207 = vmatprep.subr.mxu0 0.0
  %208 = vmatpush1.msra.mxu0 0.0
  %209 = vmatprep.subr.mxu0 0.0
  %210 = vmatpush1.msra.mxu0 0.0
  %211 = vmatprep.subr.mxu0 0.0
  %212 = vmatpush1.msra.mxu0 0.0
  %213 = vmatprep.subr.mxu0 0.0
  %214 = vmatpush1.msra.mxu0 0.0
  %215 = vmatprep.subr.mxu0 0.0
  %216 = vmatpush1.msra.mxu0 0.0
  %217 = vmatprep.subr.mxu0 0.0
  %218 = vmatpush1.msra.mxu0 0.0
  %219 = vmatprep.subr.mxu0 0.0
  %220 = vmatpush1.msra.mxu0 0.0
  %221 = vmatprep.subr.mxu0 0.0
  %222 = vmatpush1.msra.mxu0 0.0
  %223 = vmatprep.subr.mxu0 0.0
  %224 = vmatpush1.msra.mxu0 0.0
  %225 = vmatprep.subr.mxu0 0.0
  %226 = vmatpush1.msra.mxu0 0.0
  %227 = vmatprep.subr.mxu0 0.0
  %228 = vmatpush1.msra.mxu0 0.0
  %229 = vmatprep.subr.mxu0 0.0
  %230 = vmatpush1.msra.mxu0 0.0
  %231 = vmatprep.subr.mxu0 0.0
  %232 = vmatpush1.msra.mxu0 0.0
  %233 = vmatprep.subr.mxu0 0.0
  %234 = vmatpush1.msra.mxu0 0.0
  %235 = vmatprep.subr.mxu0 0.0
  %236 = vmatpush1.msra.mxu0 0.0
  %237 = vmatprep.subr.mxu0 0.0
  %238 = vmatpush1.msra.mxu0 0.0
  %239 = vmatprep.mubr.f32.mxu0 0.0
  %240 = vmatmul.mubr.f32.gmra.mrb[0].mxu0 %v32
  %v241 = vpop.f32.mrb[0].mxu0
  %v242 = vadd.f32 0.0, %v241
  %v243 = vpop.f32.mrb[0].mxu0
  %244 = vmatprep.mubr.f32.mxu0 0.0
  %245 = vmatmul.mubr.f32.gmra.mrb[0].mxu0 %v35
  %v246 = vpop.f32.mrb[0].mxu0
  %v247 = vadd.f32 0.0, %v246
  %v248 = vpop.f32.mrb[0].mxu0
  %249 = vmatprep.mubr.f32.mxu0 0.0
  %250 = vmatmul.mubr.f32.gmra.mrb[0].mxu0 %v38
  %v251 = vpop.f32.mrb[0].mxu0
  %v252 = vadd.f32 0.0, %v251
  %v253 = vpop.f32.mrb[0].mxu0
  %254 = vmatprep.mubr.f32.mxu0 0.0
  %255 = vmatmul.mubr.f32.gmra.mrb[0].mxu0 %v41
  %v256 = vpop.f32.mrb[0].mxu0
  %v257 = vadd.f32 0.0, %v256
  %v258 = vpop.f32.mrb[0].mxu0
  %259 = vmatprep.mubr.f32.mxu0 0.0
  %260 = vmatmul.mubr.f32.gmra.mrb[0].mxu0 %v44
  %v261 = vpop.f32.mrb[0].mxu0
  %v262 = vadd.f32 0.0, %v261
  %v263 = vpop.f32.mrb[0].mxu0
  %264 = vmatprep.mubr.f32.mxu0 0.0
  %265 = vmatmul.mubr.f32.gmra.mrb[0].mxu0 %v47
  %v266 = vpop.f32.mrb[0].mxu0
  %v267 = vadd.f32 0.0, %v266
  %v268 = vpop.f32.mrb[0].mxu0
  %269 = vmatprep.mubr.f32.mxu0 0.0
  %270 = vmatmul.mubr.f32.gmra.mrb[0].mxu0 %v50
  %v271 = vpop.f32.mrb[0].mxu0
  %v272 = vadd.f32 0.0, %v271
  %v273 = vpop.f32.mrb[0].mxu0
  %274 = vmatprep.mubr.f32.mxu0 0.0
  %275 = vmatmul.mubr.f32.gmra.mrb[0].mxu0 %v53
  %v276 = vpop.f32.mrb[0].mxu0
  %v277 = vadd.f32 0.0, %v276
  %v278 = vpop.f32.mrb[0].mxu0
  %279 = vdwg.mxu0
  %vm280 = vcmask 1040384
  %v281 = vsel %vm280, %v129, 0.0
  %v282 = vrot.slane %v131, 7
  %vm283 = vcmask 1041409
  %v284 = vsel %vm283, %v282, %v281
  %v285 = vrot.slane %v242, 6
  %vm286 = vcmask 1042434
  %v287 = vsel %vm286, %v285, %v284
  %v288 = vrot.slane %v129, 6
  %vm289 = vcmask 1043459
  %v290 = vsel %vm289, %v288, %v287
  %v291 = vrot.slane %v131, 5
  %vm292 = vcmask 1044484
  %v293 = vsel %vm292, %v291, %v290
  %v294 = vrot.slane %v242, 4
  %vm295 = vcmask 1045509
  %v296 = vsel %vm295, %v294, %v293
  %v297 = vrot.slane %v129, 4
  %vm298 = vcmask 1046534
  %v299 = vsel %vm298, %v297, %v296
  %v300 = vrot.slane %v131, 3
  %vm301 = vcmask 1047559
  %v302 = vsel %vm301, %v300, %v299
  %v303 = vrot.slane %v242, 2
  %v304 = vsel %vm280, %v303, 0.0
  %v305 = vrot.slane %v129, 2
  %v306 = vsel %vm283, %v305, %v304
  %v307 = vrot.slane %v131, 1
  %v308 = vsel %vm286, %v307, %v306
  %v309 = vsel %vm289, %v242, %v308
  %v310 = vsel %vm292, %v129, %v309
  %v311 = vsel %vm295, %v282, %v310
  %v312 = vsel %vm298, %v285, %v311
  %v313 = vsel %vm301, %v288, %v312
  %v314 = vsel %vm280, %v291, 0.0
  %v315 = vsel %vm283, %v294, %v314
  %v316 = vsel %vm286, %v297, %v315
  %v317 = vsel %vm289, %v300, %v316
  %v318 = vsel %vm292, %v303, %v317
  %v319 = vsel %vm295, %v305, %v318
  %v320 = vsel %vm298, %v307, %v319
  %v321 = vsel %vm301, %v242, %v320
  %v322 = vsel %vm280, %v135, 0.0
  %v323 = vrot.slane %v137, 7
  %v324 = vsel %vm283, %v323, %v322
  %v325 = vrot.slane %v247, 6
  %v326 = vsel %vm286, %v325, %v324
  %v327 = vrot.slane %v135, 6
  %v328 = vsel %vm289, %v327, %v326
  %v329 = vrot.slane %v137, 5
  %v330 = vsel %vm292, %v329, %v328
  %v331 = vrot.slane %v247, 4
  %v332 = vsel %vm295, %v331, %v330
  %v333 = vrot.slane %v135, 4
  %v334 = vsel %vm298, %v333, %v332
  %v335 = vrot.slane %v137, 3
  %v336 = vsel %vm301, %v335, %v334
  %v337 = vrot.slane %v247, 2
  %v338 = vsel %vm280, %v337, 0.0
  %v339 = vrot.slane %v135, 2
  %v340 = vsel %vm283, %v339, %v338
  %v341 = vrot.slane %v137, 1
  %v342 = vsel %vm286, %v341, %v340
  %v343 = vsel %vm289, %v247, %v342
  %v344 = vsel %vm292, %v135, %v343
  %v345 = vsel %vm295, %v323, %v344
  %v346 = vsel %vm298, %v325, %v345
  %v347 = vsel %vm301, %v327, %v346
  %v348 = vsel %vm280, %v329, 0.0
  %v349 = vsel %vm283, %v331, %v348
  %v350 = vsel %vm286, %v333, %v349
  %v351 = vsel %vm289, %v335, %v350
  %v352 = vsel %vm292, %v337, %v351
  %v353 = vsel %vm295, %v339, %v352
  %v354 = vsel %vm298, %v341, %v353
  %v355 = vsel %vm301, %v247, %v354
  %v356 = vsel %vm280, %v141, 0.0
  %v357 = vrot.slane %v143, 7
  %v358 = vsel %vm283, %v357, %v356
  %v359 = vrot.slane %v252, 6
  %v360 = vsel %vm286, %v359, %v358
  %v361 = vrot.slane %v141, 6
  %v362 = vsel %vm289, %v361, %v360
  %v363 = vrot.slane %v143, 5
  %v364 = vsel %vm292, %v363, %v362
  %v365 = vrot.slane %v252, 4
  %v366 = vsel %vm295, %v365, %v364
  %v367 = vrot.slane %v141, 4
  %v368 = vsel %vm298, %v367, %v366
  %v369 = vrot.slane %v143, 3
  %v370 = vsel %vm301, %v369, %v368
  %v371 = vrot.slane %v252, 2
  %v372 = vsel %vm280, %v371, 0.0
  %v373 = vrot.slane %v141, 2
  %v374 = vsel %vm283, %v373, %v372
  %v375 = vrot.slane %v143, 1
  %v376 = vsel %vm286, %v375, %v374
  %v377 = vsel %vm289, %v252, %v376
  %v378 = vsel %vm292, %v141, %v377
  %v379 = vsel %vm295, %v357, %v378
  %v380 = vsel %vm298, %v359, %v379
  %v381 = vsel %vm301, %v361, %v380
  %v382 = vsel %vm280, %v363, 0.0
  %v383 = vsel %vm283, %v365, %v382
  %v384 = vsel %vm286, %v367, %v383
  %v385 = vsel %vm289, %v369, %v384
  %v386 = vsel %vm292, %v371, %v385
  %v387 = vsel %vm295, %v373, %v386
  %v388 = vsel %vm298, %v375, %v387
  %v389 = vsel %vm301, %v252, %v388
  %v390 = vsel %vm280, %v147, 0.0
  %v391 = vrot.slane %v149, 7
  %v392 = vsel %vm283, %v391, %v390
  %v393 = vrot.slane %v257, 6
  %v394 = vsel %vm286, %v393, %v392
  %v395 = vrot.slane %v147, 6
  %v396 = vsel %vm289, %v395, %v394
  %v397 = vrot.slane %v149, 5
  %v398 = vsel %vm292, %v397, %v396
  %v399 = vrot.slane %v257, 4
  %v400 = vsel %vm295, %v399, %v398
  %v401 = vrot.slane %v147, 4
  %v402 = vsel %vm298, %v401, %v400
  %v403 = vrot.slane %v149, 3
  %v404 = vsel %vm301, %v403, %v402
  %v405 = vrot.slane %v257, 2
  %v406 = vsel %vm280, %v405, 0.0
  %v407 = vrot.slane %v147, 2
  %v408 = vsel %vm283, %v407, %v406
  %v409 = vrot.slane %v149, 1
  %v410 = vsel %vm286, %v409, %v408
  %v411 = vsel %vm289, %v257, %v410
  %v412 = vsel %vm292, %v147, %v411
  %v413 = vsel %vm295, %v391, %v412
  %v414 = vsel %vm298, %v393, %v413
  %v415 = vsel %vm301, %v395, %v414
  %v416 = vsel %vm280, %v397, 0.0
  %v417 = vsel %vm283, %v399, %v416
  %v418 = vsel %vm286, %v401, %v417
  %v419 = vsel %vm289, %v403, %v418
  %v420 = vsel %vm292, %v405, %v419
  %v421 = vsel %vm295, %v407, %v420
  %v422 = vsel %vm298, %v409, %v421
  %v423 = vsel %vm301, %v257, %v422
  %v424 = vsel %vm280, %v153, 0.0
  %v425 = vrot.slane %v155, 7
  %v426 = vsel %vm283, %v425, %v424
  %v427 = vrot.slane %v262, 6
  %v428 = vsel %vm286, %v427, %v426
  %v429 = vrot.slane %v153, 6
  %v430 = vsel %vm289, %v429, %v428
  %v431 = vrot.slane %v155, 5
  %v432 = vsel %vm292, %v431, %v430
  %v433 = vrot.slane %v262, 4
  %v434 = vsel %vm295, %v433, %v432
  %v435 = vrot.slane %v153, 4
  %v436 = vsel %vm298, %v435, %v434
  %v437 = vrot.slane %v155, 3
  %v438 = vsel %vm301, %v437, %v436
  %v439 = vrot.slane %v262, 2
  %v440 = vsel %vm280, %v439, 0.0
  %v441 = vrot.slane %v153, 2
  %v442 = vsel %vm283, %v441, %v440
  %v443 = vrot.slane %v155, 1
  %v444 = vsel %vm286, %v443, %v442
  %v445 = vsel %vm289, %v262, %v444
  %v446 = vsel %vm292, %v153, %v445
  %v447 = vsel %vm295, %v425, %v446
  %v448 = vsel %vm298, %v427, %v447
  %v449 = vsel %vm301, %v429, %v448
  %v450 = vsel %vm280, %v431, 0.0
  %v451 = vsel %vm283, %v433, %v450
  %v452 = vsel %vm286, %v435, %v451
  %v453 = vsel %vm289, %v437, %v452
  %v454 = vsel %vm292, %v439, %v453
  %v455 = vsel %vm295, %v441, %v454
  %v456 = vsel %vm298, %v443, %v455
  %v457 = vsel %vm301, %v262, %v456
  %v458 = vsel %vm280, %v159, 0.0
  %v459 = vrot.slane %v161, 7
  %v460 = vsel %vm283, %v459, %v458
  %v461 = vrot.slane %v267, 6
  %v462 = vsel %vm286, %v461, %v460
  %v463 = vrot.slane %v159, 6
  %v464 = vsel %vm289, %v463, %v462
  %v465 = vrot.slane %v161, 5
  %v466 = vsel %vm292, %v465, %v464
  %v467 = vrot.slane %v267, 4
  %v468 = vsel %vm295, %v467, %v466
  %v469 = vrot.slane %v159, 4
  %v470 = vsel %vm298, %v469, %v468
  %v471 = vrot.slane %v161, 3
  %v472 = vsel %vm301, %v471, %v470
  %v473 = vrot.slane %v267, 2
  %v474 = vsel %vm280, %v473, 0.0
  %v475 = vrot.slane %v159, 2
  %v476 = vsel %vm283, %v475, %v474
  %v477 = vrot.slane %v161, 1
  %v478 = vsel %vm286, %v477, %v476
  %v479 = vsel %vm289, %v267, %v478
  %v480 = vsel %vm292, %v159, %v479
  %v481 = vsel %vm295, %v459, %v480
  %v482 = vsel %vm298, %v461, %v481
  %v483 = vsel %vm301, %v463, %v482
  %v484 = vsel %vm280, %v465, 0.0
  %v485 = vsel %vm283, %v467, %v484
  %v486 = vsel %vm286, %v469, %v485
  %v487 = vsel %vm289, %v471, %v486
  %v488 = vsel %vm292, %v473, %v487
  %v489 = vsel %vm295, %v475, %v488
  %v490 = vsel %vm298, %v477, %v489
  %v491 = vsel %vm301, %v267, %v490
  %v492 = vsel %vm280, %v165, 0.0
  %v493 = vrot.slane %v167, 7
  %v494 = vsel %vm283, %v493, %v492
  %v495 = vrot.slane %v272, 6
  %v496 = vsel %vm286, %v495, %v494
  %v497 = vrot.slane %v165, 6
  %v498 = vsel %vm289, %v497, %v496
  %v499 = vrot.slane %v167, 5
  %v500 = vsel %vm292, %v499, %v498
  %v501 = vrot.slane %v272, 4
  %v502 = vsel %vm295, %v501, %v500
  %v503 = vrot.slane %v165, 4
  %v504 = vsel %vm298, %v503, %v502
  %v505 = vrot.slane %v167, 3
  %v506 = vsel %vm301, %v505, %v504
  %v507 = vrot.slane %v272, 2
  %v508 = vsel %vm280, %v507, 0.0
  %v509 = vrot.slane %v165, 2
  %v510 = vsel %vm283, %v509, %v508
  %v511 = vrot.slane %v167, 1
  %v512 = vsel %vm286, %v511, %v510
  %v513 = vsel %vm289, %v272, %v512
  %v514 = vsel %vm292, %v165, %v513
  %v515 = vsel %vm295, %v493, %v514
  %v516 = vsel %vm298, %v495, %v515
  %v517 = vsel %vm301, %v497, %v516
  %v518 = vsel %vm280, %v499, 0.0
  %v519 = vsel %vm283, %v501, %v518
  %v520 = vsel %vm286, %v503, %v519
  %v521 = vsel %vm289, %v505, %v520
  %v522 = vsel %vm292, %v507, %v521
  %v523 = vsel %vm295, %v509, %v522
  %v524 = vsel %vm298, %v511, %v523
  %v525 = vsel %vm301, %v272, %v524
  %v526 = vsel %vm280, %v171, 0.0
  %v527 = vrot.slane %v173, 7
  %v528 = vsel %vm283, %v527, %v526
  %v529 = vrot.slane %v277, 6
  %v530 = vsel %vm286, %v529, %v528
  %v531 = vrot.slane %v171, 6
  %v532 = vsel %vm289, %v531, %v530
  %v533 = vrot.slane %v173, 5
  %v534 = vsel %vm292, %v533, %v532
  %v535 = vrot.slane %v277, 4
  %v536 = vsel %vm295, %v535, %v534
  %v537 = vrot.slane %v171, 4
  %v538 = vsel %vm298, %v537, %v536
  %v539 = vrot.slane %v173, 3
  %v540 = vsel %vm301, %v539, %v538
  %v541 = vrot.slane %v277, 2
  %v542 = vsel %vm280, %v541, 0.0
  %v543 = vrot.slane %v171, 2
  %v544 = vsel %vm283, %v543, %v542
  %v545 = vrot.slane %v173, 1
  %v546 = vsel %vm286, %v545, %v544
  %v547 = vsel %vm289, %v277, %v546
  %v548 = vsel %vm292, %v171, %v547
  %v549 = vsel %vm295, %v527, %v548
  %v550 = vsel %vm298, %v529, %v549
  %v551 = vsel %vm301, %v531, %v550
  %v552 = vsel %vm280, %v533, 0.0
  %v553 = vsel %vm283, %v535, %v552
  %v554 = vsel %vm286, %v537, %v553
  %v555 = vsel %vm289, %v539, %v554
  %v556 = vsel %vm292, %v541, %v555
  %v557 = vsel %vm295, %v543, %v556
  %v558 = vsel %vm298, %v545, %v557
  %v559 = vsel %vm301, %v277, %v558
  %v560 = vld [vmem:[%s0] sm:$0xff]
  %v561 = vld [vmem:[%s0 + $0x8] sm:$0xff]
  %v562 = vld [vmem:[%s0 + $0x10] sm:$0xff]
  %v563 = vld [vmem:[%s0 + $0x18] sm:$0xff]
  %v564 = vld [vmem:[%s0 + $0x20] sm:$0xff]
  %v565 = vld [vmem:[%s0 + $0x28] sm:$0xff]
  %v566 = vld [vmem:[%s0 + $0x30] sm:$0xff]
  %v567 = vld [vmem:[%s0 + $0x38] sm:$0xff]
  %vm568 = vcmask 392192
  %v570 = vsel %vm568, %v560, 0
  %v573 = vsel %vm568, %v561, 0
  %575 = vmatprep.subr.mxu0 0.0
  %576 = vmatpush1.msra.mxu0 %v302
  %577 = vmatprep.subr.mxu0 0.0
  %578 = vmatpush1.msra.mxu0 %v313
  %579 = vmatprep.subr.mxu0 0.0
  %580 = vmatpush1.msra.mxu0 %v321
  %581 = vmatprep.subr.mxu0 0.0
  %582 = vmatpush1.msra.mxu0 %v336
  %583 = vmatprep.subr.mxu0 0.0
  %584 = vmatpush1.msra.mxu0 %v347
  %585 = vmatprep.subr.mxu0 0.0
  %586 = vmatpush1.msra.mxu0 %v355
  %587 = vmatprep.subr.mxu0 0.0
  %588 = vmatpush1.msra.mxu0 0.0
  %589 = vmatprep.subr.mxu0 0.0
  %590 = vmatpush1.msra.mxu0 0.0
  %591 = vmatprep.subr.mxu0 0.0
  %592 = vmatpush1.msra.mxu0 0.0
  %593 = vmatprep.subr.mxu0 0.0
  %594 = vmatpush1.msra.mxu0 0.0
  %595 = vmatprep.subr.mxu0 0.0
  %596 = vmatpush1.msra.mxu0 0.0
  %597 = vmatprep.subr.mxu0 0.0
  %598 = vmatpush1.msra.mxu0 0.0
  %599 = vmatprep.subr.mxu0 0.0
  %600 = vmatpush1.msra.mxu0 0.0
  %601 = vmatprep.subr.mxu0 0.0
  %602 = vmatpush1.msra.mxu0 0.0
  %603 = vmatprep.subr.mxu0 0.0
  %604 = vmatpush1.msra.mxu0 0.0
  %605 = vmatprep.subr.mxu0 0.0
  %606 = vmatpush1.msra.mxu0 0.0
  %607 = vmatprep.subr.mxu0 0.0
  %608 = vmatpush1.msra.mxu0 0.0
  %609 = vmatprep.subr.mxu0 0.0
  %610 = vmatpush1.msra.mxu0 0.0
  %611 = vmatprep.subr.mxu0 0.0
  %612 = vmatpush1.msra.mxu0 0.0
  %613 = vmatprep.subr.mxu0 0.0
  %614 = vmatpush1.msra.mxu0 0.0
  %615 = vmatprep.subr.mxu0 0.0
  %616 = vmatpush1.msra.mxu0 0.0
  %617 = vmatprep.subr.mxu0 0.0
  %618 = vmatpush1.msra.mxu0 0.0
  %619 = vmatprep.subr.mxu0 0.0
  %620 = vmatpush1.msra.mxu0 0.0
  %621 = vmatprep.subr.mxu0 0.0
  %622 = vmatpush1.msra.mxu0 0.0
  %623 = vmatprep.subr.mxu0 0.0
  %624 = vmatpush1.msra.mxu0 0.0
  %625 = vmatprep.subr.mxu0 0.0
  %626 = vmatpush1.msra.mxu0 0.0
  %627 = vmatprep.subr.mxu0 0.0
  %628 = vmatpush1.msra.mxu0 0.0
  %629 = vmatprep.subr.mxu0 0.0
  %630 = vmatpush1.msra.mxu0 0.0
  %631 = vmatprep.subr.mxu0 0.0
  %632 = vmatpush1.msra.mxu0 0.0
  %633 = vmatprep.subr.mxu0 0.0
  %634 = vmatpush1.msra.mxu0 0.0
  %635 = vmatprep.subr.mxu0 0.0
  %636 = vmatpush1.msra.mxu0 0.0
  %637 = vmatprep.subr.mxu0 0.0
  %638 = vmatpush1.msra.mxu0 0.0
  %639 = vmatprep.mubr.f32.mxu0 0.0
  %640 = vmatmul.mubr.f32.gmra.mrb[0].mxu0 %v570
  %v641 = vpop.f32.mrb[0].mxu0
  %v642 = vadd.f32 0.0, %v641
  %v643 = vpop.f32.mrb[0].mxu0
  %644 = vmatprep.mubr.f32.mxu0 0.0
  %645 = vmatmul.mubr.f32.gmra.mrb[0].mxu0 %v573
  %v646 = vpop.f32.mrb[0].mxu0
  %v647 = vadd.f32 0.0, %v646
  %v648 = vpop.f32.mrb[0].mxu0
  %649 = vdwg.mxu0
  %v651 = vsel %vm568, %v562, 0
  %v654 = vsel %vm568, %v563, 0
  %656 = vmatprep.subr.mxu0 0.0
  %657 = vmatpush1.msra.mxu0 %v370
  %658 = vmatprep.subr.mxu0 0.0
  %659 = vmatpush1.msra.mxu0 %v381
  %660 = vmatprep.subr.mxu0 0.0
  %661 = vmatpush1.msra.mxu0 %v389
  %662 = vmatprep.subr.mxu0 0.0
  %663 = vmatpush1.msra.mxu0 %v404
  %664 = vmatprep.subr.mxu0 0.0
  %665 = vmatpush1.msra.mxu0 %v415
  %666 = vmatprep.subr.mxu0 0.0
  %667 = vmatpush1.msra.mxu0 %v423
  %668 = vmatprep.subr.mxu0 0.0
  %669 = vmatpush1.msra.mxu0 0.0
  %670 = vmatprep.subr.mxu0 0.0
  %671 = vmatpush1.msra.mxu0 0.0
  %672 = vmatprep.subr.mxu0 0.0
  %673 = vmatpush1.msra.mxu0 0.0
  %674 = vmatprep.subr.mxu0 0.0
  %675 = vmatpush1.msra.mxu0 0.0
  %676 = vmatprep.subr.mxu0 0.0
  %677 = vmatpush1.msra.mxu0 0.0
  %678 = vmatprep.subr.mxu0 0.0
  %679 = vmatpush1.msra.mxu0 0.0
  %680 = vmatprep.subr.mxu0 0.0
  %681 = vmatpush1.msra.mxu0 0.0
  %682 = vmatprep.subr.mxu0 0.0
  %683 = vmatpush1.msra.mxu0 0.0
  %684 = vmatprep.subr.mxu0 0.0
  %685 = vmatpush1.msra.mxu0 0.0
  %686 = vmatprep.subr.mxu0 0.0
  %687 = vmatpush1.msra.mxu0 0.0
  %688 = vmatprep.subr.mxu0 0.0
  %689 = vmatpush1.msra.mxu0 0.0
  %690 = vmatprep.subr.mxu0 0.0
  %691 = vmatpush1.msra.mxu0 0.0
  %692 = vmatprep.subr.mxu0 0.0
  %693 = vmatpush1.msra.mxu0 0.0
  %694 = vmatprep.subr.mxu0 0.0
  %695 = vmatpush1.msra.mxu0 0.0
  %696 = vmatprep.subr.mxu0 0.0
  %697 = vmatpush1.msra.mxu0 0.0
  %698 = vmatprep.subr.mxu0 0.0
  %699 = vmatpush1.msra.mxu0 0.0
  %700 = vmatprep.subr.mxu0 0.0
  %701 = vmatpush1.msra.mxu0 0.0
  %702 = vmatprep.subr.mxu0 0.0
  %703 = vmatpush1.msra.mxu0 0.0
  %704 = vmatprep.subr.mxu0 0.0
  %705 = vmatpush1.msra.mxu0 0.0
  %706 = vmatprep.subr.mxu0 0.0
  %707 = vmatpush1.msra.mxu0 0.0
  %708 = vmatprep.subr.mxu0 0.0
  %709 = vmatpush1.msra.mxu0 0.0
  %710 = vmatprep.subr.mxu0 0.0
  %711 = vmatpush1.msra.mxu0 0.0
  %712 = vmatprep.subr.mxu0 0.0
  %713 = vmatpush1.msra.mxu0 0.0
  %714 = vmatprep.subr.mxu0 0.0
  %715 = vmatpush1.msra.mxu0 0.0
  %716 = vmatprep.subr.mxu0 0.0
  %717 = vmatpush1.msra.mxu0 0.0
  %718 = vmatprep.subr.mxu0 0.0
  %719 = vmatpush1.msra.mxu0 0.0
  %720 = vmatprep.mubr.f32.mxu0 0.0
  %721 = vmatmul.mubr.f32.gmra.mrb[0].mxu0 %v651
  %v722 = vpop.f32.mrb[0].mxu0
  %v723 = vadd.f32 0.0, %v722
  %v724 = vpop.f32.mrb[0].mxu0
  %725 = vmatprep.mubr.f32.mxu0 0.0
  %726 = vmatmul.mubr.f32.gmra.mrb[0].mxu0 %v654
  %v727 = vpop.f32.mrb[0].mxu0
  %v728 = vadd.f32 0.0, %v727
  %v729 = vpop.f32.mrb[0].mxu0
  %730 = vdwg.mxu0
  %v732 = vsel %vm568, %v564, 0
  %v735 = vsel %vm568, %v565, 0
  %737 = vmatprep.subr.mxu0 0.0
  %738 = vmatpush1.msra.mxu0 %v438
  %739 = vmatprep.subr.mxu0 0.0
  %740 = vmatpush1.msra.mxu0 %v449
  %741 = vmatprep.subr.mxu0 0.0
  %742 = vmatpush1.msra.mxu0 %v457
  %743 = vmatprep.subr.mxu0 0.0
  %744 = vmatpush1.msra.mxu0 %v472
  %745 = vmatprep.subr.mxu0 0.0
  %746 = vmatpush1.msra.mxu0 %v483
  %747 = vmatprep.subr.mxu0 0.0
  %748 = vmatpush1.msra.mxu0 %v491
  %749 = vmatprep.subr.mxu0 0.0
  %750 = vmatpush1.msra.mxu0 0.0
  %751 = vmatprep.subr.mxu0 0.0
  %752 = vmatpush1.msra.mxu0 0.0
  %753 = vmatprep.subr.mxu0 0.0
  %754 = vmatpush1.msra.mxu0 0.0
  %755 = vmatprep.subr.mxu0 0.0
  %756 = vmatpush1.msra.mxu0 0.0
  %757 = vmatprep.subr.mxu0 0.0
  %758 = vmatpush1.msra.mxu0 0.0
  %759 = vmatprep.subr.mxu0 0.0
  %760 = vmatpush1.msra.mxu0 0.0
  %761 = vmatprep.subr.mxu0 0.0
  %762 = vmatpush1.msra.mxu0 0.0
  %763 = vmatprep.subr.mxu0 0.0
  %764 = vmatpush1.msra.mxu0 0.0
  %765 = vmatprep.subr.mxu0 0.0
  %766 = vmatpush1.msra.mxu0 0.0
  %767 = vmatprep.subr.mxu0 0.0
  %768 = vmatpush1.msra.mxu0 0.0
  %769 = vmatprep.subr.mxu0 0.0
  %770 = vmatpush1.msra.mxu0 0.0
  %771 = vmatprep.subr.mxu0 0.0
  %772 = vmatpush1.msra.mxu0 0.0
  %773 = vmatprep.subr.mxu0 0.0
  %774 = vmatpush1.msra.mxu0 0.0
  %775 = vmatprep.subr.mxu0 0.0
  %776 = vmatpush1.msra.mxu0 0.0
  %777 = vmatprep.subr.mxu0 0.0
  %778 = vmatpush1.msra.mxu0 0.0
  %779 = vmatprep.subr.mxu0 0.0
  %780 = vmatpush1.msra.mxu0 0.0
  %781 = vmatprep.subr.mxu0 0.0
  %782 = vmatpush1.msra.mxu0 0.0
  %783 = vmatprep.subr.mxu0 0.0
  %784 = vmatpush1.msra.mxu0 0.0
  %785 = vmatprep.subr.mxu0 0.0
  %786 = vmatpush1.msra.mxu0 0.0
  %787 = vmatprep.subr.mxu0 0.0
  %788 = vmatpush1.msra.mxu0 0.0
  %789 = vmatprep.subr.mxu0 0.0
  %790 = vmatpush1.msra.mxu0 0.0
  %791 = vmatprep.subr.mxu0 0.0
  %792 = vmatpush1.msra.mxu0 0.0
  %793 = vmatprep.subr.mxu0 0.0
  %794 = vmatpush1.msra.mxu0 0.0
  %795 = vmatprep.subr.mxu0 0.0
  %796 = vmatpush1.msra.mxu0 0.0
  %797 = vmatprep.subr.mxu0 0.0
  %798 = vmatpush1.msra.mxu0 0.0
  %799 = vmatprep.subr.mxu0 0.0
  %800 = vmatpush1.msra.mxu0 0.0
  %801 = vmatprep.mubr.f32.mxu0 0.0
  %802 = vmatmul.mubr.f32.gmra.mrb[0].mxu0 %v732
  %v803 = vpop.f32.mrb[0].mxu0
  %v804 = vadd.f32 0.0, %v803
  %v805 = vpop.f32.mrb[0].mxu0
  %806 = vmatprep.mubr.f32.mxu0 0.0
  %807 = vmatmul.mubr.f32.gmra.mrb[0].mxu0 %v735
  %v808 = vpop.f32.mrb[0].mxu0
  %v809 = vadd.f32 0.0, %v808
  %v810 = vpop.f32.mrb[0].mxu0
  %811 = vdwg.mxu0
  %v813 = vsel %vm568, %v566, 0
  %v816 = vsel %vm568, %v567, 0
  %818 = vmatprep.subr.mxu0 0.0
  %819 = vmatpush1.msra.mxu0 %v506
  %820 = vmatprep.subr.mxu0 0.0
  %821 = vmatpush1.msra.mxu0 %v517
  %822 = vmatprep.subr.mxu0 0.0
  %823 = vmatpush1.msra.mxu0 %v525
  %824 = vmatprep.subr.mxu0 0.0
  %825 = vmatpush1.msra.mxu0 %v540
  %826 = vmatprep.subr.mxu0 0.0
  %827 = vmatpush1.msra.mxu0 %v551
  %828 = vmatprep.subr.mxu0 0.0
  %829 = vmatpush1.msra.mxu0 %v559
  %830 = vmatprep.subr.mxu0 0.0
  %831 = vmatpush1.msra.mxu0 0.0
  %832 = vmatprep.subr.mxu0 0.0
  %833 = vmatpush1.msra.mxu0 0.0
  %834 = vmatprep.subr.mxu0 0.0
  %835 = vmatpush1.msra.mxu0 0.0
  %836 = vmatprep.subr.mxu0 0.0
  %837 = vmatpush1.msra.mxu0 0.0
  %838 = vmatprep.subr.mxu0 0.0
  %839 = vmatpush1.msra.mxu0 0.0
  %840 = vmatprep.subr.mxu0 0.0
  %841 = vmatpush1.msra.mxu0 0.0
  %842 = vmatprep.subr.mxu0 0.0
  %843 = vmatpush1.msra.mxu0 0.0
  %844 = vmatprep.subr.mxu0 0.0
  %845 = vmatpush1.msra.mxu0 0.0
  %846 = vmatprep.subr.mxu0 0.0
  %847 = vmatpush1.msra.mxu0 0.0
  %848 = vmatprep.subr.mxu0 0.0
  %849 = vmatpush1.msra.mxu0 0.0
  %850 = vmatprep.subr.mxu0 0.0
  %851 = vmatpush1.msra.mxu0 0.0
  %852 = vmatprep.subr.mxu0 0.0
  %853 = vmatpush1.msra.mxu0 0.0
  %854 = vmatprep.subr.mxu0 0.0
  %855 = vmatpush1.msra.mxu0 0.0
  %856 = vmatprep.subr.mxu0 0.0
  %857 = vmatpush1.msra.mxu0 0.0
  %858 = vmatprep.subr.mxu0 0.0
  %859 = vmatpush1.msra.mxu0 0.0
  %860 = vmatprep.subr.mxu0 0.0
  %861 = vmatpush1.msra.mxu0 0.0
  %862 = vmatprep.subr.mxu0 0.0
  %863 = vmatpush1.msra.mxu0 0.0
  %864 = vmatprep.subr.mxu0 0.0
  %865 = vmatpush1.msra.mxu0 0.0
  %866 = vmatprep.subr.mxu0 0.0
  %867 = vmatpush1.msra.mxu0 0.0
  %868 = vmatprep.subr.mxu0 0.0
  %869 = vmatpush1.msra.mxu0 0.0
  %870 = vmatprep.subr.mxu0 0.0
  %871 = vmatpush1.msra.mxu0 0.0
  %872 = vmatprep.subr.mxu0 0.0
  %873 = vmatpush1.msra.mxu0 0.0
  %874 = vmatprep.subr.mxu0 0.0
  %875 = vmatpush1.msra.mxu0 0.0
  %876 = vmatprep.subr.mxu0 0.0
  %877 = vmatpush1.msra.mxu0 0.0
  %878 = vmatprep.subr.mxu0 0.0
  %879 = vmatpush1.msra.mxu0 0.0
  %880 = vmatprep.subr.mxu0 0.0
  %881 = vmatpush1.msra.mxu0 0.0
  %882 = vmatprep.mubr.f32.mxu0 0.0
  %883 = vmatmul.mubr.f32.gmra.mrb[0].mxu0 %v813
  %v884 = vpop.f32.mrb[0].mxu0
  %v885 = vadd.f32 0.0, %v884
  %v886 = vpop.f32.mrb[0].mxu0
  %887 = vmatprep.mubr.f32.mxu0 0.0
  %888 = vmatmul.mubr.f32.gmra.mrb[0].mxu0 %v816
  %v889 = vpop.f32.mrb[0].mxu0
  %v890 = vadd.f32 0.0, %v889
  %v891 = vpop.f32.mrb[0].mxu0
  %892 = vdwg.mxu0
  %v893 = vld [vmem:[%s3] sm:$0x1]
  %v895 = vlaneseq
  %v896 = vshrl.u32 %v895, 7
  %v897 = vsub.s32 0, %v896
  %v898 = vrot.slane %v893, %v897
  %v900 = vadd.f32 %v642, %v898
  %v901 = vadd.f32 %v647, %v898
  %v902 = vadd.f32 %v723, %v898
  %v903 = vadd.f32 %v728, %v898
  %v904 = vadd.f32 %v804, %v898
  %v905 = vadd.f32 %v809, %v898
  %v906 = vadd.f32 %v885, %v898
  %v907 = vadd.f32 %v890, %v898
  %vm908 = vcmask 39936
  %909 = vst.msk [vmem:[%s4] sm:$0xff] %vm908, %v900
  %910 = vst.msk [vmem:[%s4 + $0x8] sm:$0xff] %vm908, %v901
  %911 = vst.msk [vmem:[%s4 + $0x10] sm:$0xff] %vm908, %v902
  %912 = vst.msk [vmem:[%s4 + $0x18] sm:$0xff] %vm908, %v903
  %913 = vst.msk [vmem:[%s4 + $0x20] sm:$0xff] %vm908, %v904
  %914 = vst.msk [vmem:[%s4 + $0x28] sm:$0xff] %vm908, %v905
  %915 = vst.msk [vmem:[%s4 + $0x30] sm:$0xff] %vm908, %v906
  %916 = vst.msk [vmem:[%s4 + $0x38] sm:$0xff] %vm908, %v907
  // Predicated region
  $region18: #{tpu_custom_call.1} parent=0 // pred_check
    _
  $region19: #{tpu_custom_call.1} parent=0 // pred_check_branch
    %918 = sbr.rel (0) target = $region21
  $region20: #{tpu_custom_call.1} parent=0 // pred_region
    _
  $region21: #{tpu_custom_call.1} parent=0 // pred_fallthru
    _
  // Predicated region
  $region22: #{tpu_custom_call.1} parent=0 // pred_check
    _
  $region23: #{tpu_custom_call.1} parent=0 // pred_check_branch
    %920 = sbr.rel (0) target = $region25
  $region24: #{tpu_custom_call.1} parent=0 // pred_region
    _
  $region25: #{tpu_custom_call.1} parent=0 // pred_fallthru
    _

</llo_original>
